<compile_context>
chip_gen: v7x
topology: tpu7x:2x2x1
jax: 0.10.0
libtpu: 0.0.40
codegen_flags: <defaults>
</compile_context>

<pallas_src>
import jax
import jax.numpy as jnp
from jax import lax
from jax.experimental import pallas as pl
from jax.experimental.pallas import tpu as pltpu


# ---------------- Pallas kernels ----------------

def _normed_matmul_kernel(x_ref, xinv_ref, w_ref, winv_ref, o_ref):
    # x: (tm, K) raw, w: (K, tn) raw, xinv: (tm, 1) f32, winv: (1, tn) f32.
    # Raw MXU dot in f32, normalization applied as an epilogue scale.
    acc = jnp.dot(x_ref[...], w_ref[...], preferred_element_type=jnp.float32)
    o_ref[...] = (acc * xinv_ref[...] * winv_ref[...]).astype(o_ref.dtype)


def _normed_matmul_acc_kernel(x_ref, xinv_ref, w_ref, winv_ref, o_ref, acc_ref):
    # Same, with a K reduction axis (innermost, "arbitrary") and a resident f32
    # accumulator; the epilogue scaling is applied only at the last K step.
    k = pl.program_id(2)

    @pl.when(k == 0)
    def _():
        acc_ref[...] = jnp.zeros_like(acc_ref)

    acc_ref[...] += jnp.dot(x_ref[...], w_ref[...],
                            preferred_element_type=jnp.float32)

    @pl.when(k == pl.num_programs(2) - 1)
    def _():
        o_ref[...] = (acc_ref[...] * xinv_ref[...] * winv_ref[...]).astype(
            o_ref.dtype)


# ---------------- helpers ----------------

def _round_up(a, b):
    return (a + b - 1) // b * b


def _pad2(a, rows, cols):
    pr, pc = rows - a.shape[0], cols - a.shape[1]
    if pr or pc:
        a = jnp.pad(a, ((0, pr), (0, pc)))
    return a


def _vmem_budget_bytes():
    """Generation-aware usable VMEM (leave headroom for internal scratch)."""
    cap = 64 * 2 ** 20  # conservative default == v7x per-TC physical VMEM
    try:
        info = pltpu.get_tpu_info()
        cap = int(getattr(info, "vmem_capacity_bytes", cap))
    except Exception:
        pass
    # v7x (64 MiB) -> ~52 MiB usable; v5e/v6e (128 MiB) -> ~108 MiB usable.
    return max(32 * 2 ** 20, min(cap - 12 * 2 ** 20, int(cap * 0.85)))


# ---------------- module wrapper (weight prep cached once) ----------------

class NormedLinearPallas:
    """NormedLinear.forward on TPU: F.normalize(x,1) @ F.normalize(W,0)."""

    def __init__(self, weight, *, matmul_dtype=None, out_dtype=jnp.float32,
                 tn=None, tk=None, tm_cap=256, deep_w_buffer=True):
        assert weight.ndim == 2
        K, N = weight.shape
        self.K, self.N = int(K), int(N)
        self.out_dtype = out_dtype
        self.tm_cap = int(tm_cap)
        self.deep_w_buffer = bool(deep_w_buffer)
        self.budget = _vmem_budget_bytes()

        # ---- one-time weight prep (cached across calls) ---------------------
        # Inverse column L2 norms of the RAW weight, in f32 (F.normalize eps).
        eps2 = jnp.float32(1e-12) ** 2
        w_sq = jnp.sum(jnp.square(weight.astype(jnp.float32)), axis=0,
                       keepdims=True)
        w_inv = lax.rsqrt(jnp.maximum(w_sq, eps2))                 # (1, N) f32

        self.w_dtype = weight.dtype if matmul_dtype is None else matmul_dtype
        self.isz = jnp.dtype(self.w_dtype).itemsize
        self.out_isz = jnp.dtype(out_dtype).itemsize

        self.tn, self.tk = self._choose_tiles(tn, tk)
        self.K_pad = _round_up(self.K, 128 if self.tk is None else self.tk)
        self.N_pad = _round_up(self.N, self.tn)
        # Split the N tile when the N grid would be a single point so both v7x
        # TensorCores get work; elsewhere it just costs one extra grid step.
        if tn is None and self.N_pad // self.tn == 1 and self.N_pad >= 256:
            self.tn = self.N_pad // 2
        self.nk = 1 if self.tk is None else self.K_pad // self.tk

        # Cast + pad W once (fused single pass); padded regions are zeros and
        # their inverse norms are padded with zeros -> padded outputs are 0.
        self.w = _pad2(weight.astype(self.w_dtype), self.K_pad, self.N_pad)
        self.w_inv = _pad2(w_inv, 1, self.N_pad)

    # -------------------------------------------------------------------------
    def _choose_tiles(self, tn_req, tk_req):
        K128 = _round_up(self.K, 128)
        N128 = _round_up(self.N, 128)
        if tn_req is not None:
            tn_cands = [max(128, _round_up(int(tn_req), 128))]
        else:
            tn_cands = [t for t in (512, 256, 128) if t <= N128] or [N128]

        def vmem_need(tn, kk, acc):
            # Double-buffered pipeline step at the worst-case (tm_cap) M tile.
            return (2 * kk * tn * self.isz                # W tiles
                    + 2 * self.tm_cap * kk * self.isz     # x tiles
                    + 2 * (self.tm_cap + tn) * 4          # xinv / winv tiles
                    + 2 * self.tm_cap * tn * self.out_isz # output tiles
                    + (self.tm_cap * tn * 4 if acc else 0))

        if tk_req is not None:
            return tn_cands[0], _round_up(min(int(tk_req), self.K), 128)

        for tn in tn_cands:
            if vmem_need(tn, K128, acc=False) <= self.budget:
                return tn, None                           # K fully resident
            # Auto-tk: needed for big K / f32 on v7x's 64 MiB VMEM.
            fixed = (2 * (self.tm_cap + tn) * 4
                     + 2 * self.tm_cap * tn * self.out_isz
                     + self.tm_cap * tn * 4)
            per_k = 2 * self.isz * (tn + self.tm_cap)
            tk_max = int((self.budget - fixed) // per_k) // 128 * 128
            if tk_max >= 128:
                return tn, min(tk_max, K128)
        return 128, 128                                   # last-resort tiny tiles

    # -------------------------------------------------------------------------
    def __call__(self, x):
        assert x.ndim == 2 and x.shape[1] == self.K
        B = x.shape[0]

        # Row inverse norms from the raw activations (f32), then optional cast.
        eps2 = jnp.float32(1e-12) ** 2
        x_inv = lax.rsqrt(jnp.maximum(
            jnp.sum(jnp.square(x.astype(jnp.float32)), axis=1, keepdims=True),
            eps2))
        if x.dtype != self.w_dtype:
            x = x.astype(self.w_dtype)

        sublane = {4: 8, 2: 16, 1: 32}.get(self.isz, 8)
        tm = min(_round_up(B, sublane), self.tm_cap)
        B_pad = _round_up(B, tm)

        x_p = _pad2(x, B_pad, self.K_pad)
        xinv_p = _pad2(x_inv, B_pad, 1)

        tn, K_pad, N_pad, nk = self.tn, self.K_pad, self.N_pad, self.nk
        tk = K_pad if self.tk is None else self.tk
        ni, nj = B_pad // tm, N_pad // tn

        # Loop order: keep the larger operand resident across the inner loop so
        # total HBM traffic ~= min(|x|,|W|) * n_outer + max(|x|,|W|).
        x_bytes = B_pad * K_pad * self.isz
        w_bytes = K_pad * N_pad * self.isz
        x_outer = (x_bytes + w_bytes * ni) < (w_bytes + x_bytes * nj)

        def build_and_run(w_bufs):
            w_kw = {}
            if w_bufs > 2 and hasattr(pl, "Buffered"):
                w_kw = {"pipeline_mode": pl.Buffered(w_bufs)}

            if nk == 1:
                kernel = _normed_matmul_kernel
                dims = ("parallel", "parallel")
                scratch = []
                if x_outer:
                    grid = (ni, nj)
                    xm = lambda i, j: (i, 0); xim = lambda i, j: (i, 0)
                    wm = lambda i, j: (0, j); wim = lambda i, j: (0, j)
                    om = lambda i, j: (i, j)
                else:
                    grid = (nj, ni)
                    xm = lambda j, i: (i, 0); xim = lambda j, i: (i, 0)
                    wm = lambda j, i: (0, j); wim = lambda j, i: (0, j)
                    om = lambda j, i: (i, j)
                x_blk, w_blk = (tm, K_pad), (K_pad, tn)
            else:
                kernel = _normed_matmul_acc_kernel
                dims = ("parallel", "parallel", "arbitrary")
                scratch = [pltpu.VMEM((tm, tn), jnp.float32)]
                if x_outer:
                    grid = (ni, nj, nk)
                    xm = lambda i, j, k: (i, k); xim = lambda i, j, k: (i, 0)
                    wm = lambda i, j, k: (k, j); wim = lambda i, j, k: (0, j)
                    om = lambda i, j, k: (i, j)
                else:
                    grid = (nj, ni, nk)
                    xm = lambda j, i, k: (i, k); xim = lambda j, i, k: (i, 0)
                    wm = lambda j, i, k: (k, j); wim = lambda j, i, k: (0, j)
                    om = lambda j, i, k: (i, j)
                x_blk, w_blk = (tm, tk), (tk, tn)

            in_specs = [
                pl.BlockSpec(x_blk, xm),
                pl.BlockSpec((tm, 1), xim),
                pl.BlockSpec(w_blk, wm, **w_kw),
                pl.BlockSpec((1, tn), wim),
            ]
            out_specs = pl.BlockSpec((tm, tn), om)

            n_wbuf = w_bufs if w_kw else 2
            need = (n_wbuf * tk * tn * self.isz + 2 * tm * tk * self.isz
                    + 2 * (tm + tn) * 4 + 2 * tm * tn * self.out_isz
                    + (tm * tn * 4 if nk > 1 else 0))
            vmem_limit = int(min(self.budget, max(32 * 2 ** 20, 2 * need)))

            return pl.pallas_call(
                kernel,
                out_shape=jax.ShapeDtypeStruct((B_pad, N_pad), self.out_dtype),
                grid_spec=pltpu.PrefetchScalarGridSpec(
                    num_scalar_prefetch=0,
                    grid=grid,
                    in_specs=in_specs,
                    out_specs=out_specs,
                    scratch_shapes=scratch),
                compiler_params=pltpu.CompilerParams(
                    dimension_semantics=dims,
                    vmem_limit_bytes=vmem_limit),
            )(x_p, xinv_p, self.w, self.w_inv)

        want_deep = (self.deep_w_buffer and hasattr(pl, "Buffered")
                     and (3 * tk * tn * self.isz + 2 * tm * tk * self.isz
                          + 2 * (tm + tn) * 4 + 2 * tm * tn * self.out_isz
                          + (tm * tn * 4 if nk > 1 else 0)) <= self.budget)
        if want_deep:
            try:
                out_p = build_and_run(3)
            except Exception:           # pipeline_mode unsupported -> default
                out_p = build_and_run(2)
        else:
            out_p = build_and_run(2)

        return out_p[:B, :self.N]


def normed_linear(x, weight, **kwargs):
    """One-shot convenience wrapper (prep not cached across calls)."""
    return NormedLinearPallas(weight, **kwargs)(x)


# ---------------- reference ----------------

def _reference(x, w):
    xn = x / jnp.maximum(jnp.linalg.norm(x, axis=1, keepdims=True), 1e-12)
    wn = w / jnp.maximum(jnp.linalg.norm(w, axis=0, keepdims=True), 1e-12)
    return xn @ wn


# ---------------- main ----------------

if __name__ == "__main__":
    key = jax.random.PRNGKey(0)
    kx, kw, kx2, kw2 = jax.random.split(key, 4)

    # Shapes consistent with the module: in_features=256, out_features=128, batch=8.
    B, K, N = 8, 256, 128
    x = jax.random.normal(kx, (B, K), dtype=jnp.float32)
    # NormedLinear init: uniform(-1,1), columns renormalized to unit L2 norm
    # (renorm_(2, 1, 1e-5).mul_(1e5)).
    w_raw = jax.random.uniform(kw, (K, N), jnp.float32, -1.0, 1.0)
    w = w_raw / jnp.maximum(jnp.linalg.norm(w_raw, axis=0, keepdims=True), 1e-12)

    ref = _reference(x, w)

    # 1) f32 path with cached weight prep; second call reuses the prepared W.
    mod = NormedLinearPallas(w)
    out = jax.block_until_ready(mod(x))
    assert out.shape == (B, N)
    assert jnp.allclose(out, ref, atol=2e-3, rtol=2e-3)
    out_again = jax.block_until_ready(mod(x))
    assert jnp.allclose(out_again, ref, atol=2e-3, rtol=2e-3)

    # 2) bf16 matmul operands (half W HBM traffic), f32 accumulate + epilogue.
    out_bf16 = jax.block_until_ready(
        NormedLinearPallas(w, matmul_dtype=jnp.bfloat16)(x))
    assert out_bf16.shape == (B, N)
    assert jnp.allclose(out_bf16, ref, atol=2e-2, rtol=2e-2)

    # 3) Forced K-tiled reduction path (accumulator kernel, epilogue at last k).
    out_k = jax.block_until_ready(NormedLinearPallas(w, tk=128)(x))
    assert jnp.allclose(out_k, ref, atol=2e-3, rtol=2e-3)

    # 4) Ragged shapes: B, K, N not multiples of the tiles -> padding path.
    B2, K2, N2 = 5, 192, 200
    x2 = jax.random.normal(kx2, (B2, K2), dtype=jnp.float32)
    w2 = jax.random.uniform(kw2, (K2, N2), jnp.float32, -1.0, 1.0)
    out2 = jax.block_until_ready(normed_linear(x2, w2))
    assert out2.shape == (B2, N2)
    assert jnp.allclose(out2, _reference(x2, w2), atol=2e-3, rtol=2e-3)

    print("KERNEL_OK")
</pallas_src>

<mosaic_0001>
module attributes {stable_mosaic.version = 11 : i64} {
  func.func @_normed_matmul_kernel(%arg0: i32, %arg1: i32, %arg2: memref<8x256xf32, #tpu.memory_space<vmem>>, %arg3: memref<8x1xf32, #tpu.memory_space<vmem>>, %arg4: memref<256x128xf32, #tpu.memory_space<vmem>>, %arg5: memref<1x128xf32, #tpu.memory_space<vmem>>, %arg6: memref<8x128xf32, #tpu.memory_space<vmem>>) attributes {dimension_semantics = [#tpu.dimension_semantics<parallel>, #tpu.dimension_semantics<parallel>], iteration_bounds = array<i64: 1, 1>, scalar_prefetch = 0 : i64, scratch_operands = 0 : i64, tpu.core_type = #tpu.core_type<tc>, window_params = [{transform_indices = @transform_0, window_bounds = array<i64: 8, 256>}, {transform_indices = @transform_1, window_bounds = array<i64: 8, 1>}, {transform_indices = @transform_2, window_bounds = array<i64: 256, 128>}, {transform_indices = @transform_3, window_bounds = array<i64: 1, 128>}, {transform_indices = @transform_4, window_bounds = array<i64: 8, 128>}]} {
    %c0 = arith.constant 0 : index
    %c0_0 = arith.constant 0 : index
    %0 = vector.load %arg2[%c0, %c0_0] : memref<8x256xf32, #tpu.memory_space<vmem>>, vector<8x256xf32>
    %c0_1 = arith.constant 0 : index
    %c0_2 = arith.constant 0 : index
    %1 = vector.load %arg4[%c0_1, %c0_2] : memref<256x128xf32, #tpu.memory_space<vmem>>, vector<256x128xf32>
    %cst = arith.constant dense<0.000000e+00> : vector<8x128xf32>
    %2 = tpu.matmul %0, %1, %cst {dimension_numbers = #tpu.dot_dimension_numbers<[1], [0], [0], [1], [0, 0, 1, 1], [], []>} : vector<8x256xf32>, vector<256x128xf32>, vector<8x128xf32> -> vector<8x128xf32>
    %c0_3 = arith.constant 0 : index
    %c0_4 = arith.constant 0 : index
    %3 = vector.load %arg3[%c0_3, %c0_4] : memref<8x1xf32, #tpu.memory_space<vmem>>, vector<8x1xf32>
    %4 = vector.broadcast %3 : vector<8x1xf32> to vector<8x128xf32>
    %5 = arith.mulf %2, %4 : vector<8x128xf32>
    %c0_5 = arith.constant 0 : index
    %c0_6 = arith.constant 0 : index
    %6 = vector.load %arg5[%c0_5, %c0_6] : memref<1x128xf32, #tpu.memory_space<vmem>>, vector<1x128xf32>
    %7 = vector.broadcast %6 : vector<1x128xf32> to vector<8x128xf32>
    %8 = arith.mulf %5, %7 : vector<8x128xf32>
    %c0_7 = arith.constant 0 : index
    %c0_8 = arith.constant 0 : index
    %9 = vector.load %arg6[%c0_7, %c0_8] : memref<8x128xf32, #tpu.memory_space<vmem>>, vector<8x128xf32>
    tpu.vector_store %arg6[%c0_7, %c0_8], %8 {strides = array<i32>} : memref<8x128xf32, #tpu.memory_space<vmem>>, vector<8x128xf32>,
    return
  }
  func.func @transform_0(%arg0: i32, %arg1: i32) -> (i32, i32) {
    %c0_i32 = arith.constant 0 : i32
    %c0_i32_0 = arith.constant 0 : i32
    return %arg1, %c0_i32 : i32, i32
  }
  func.func @transform_1(%arg0: i32, %arg1: i32) -> (i32, i32) {
    %c0_i32 = arith.constant 0 : i32
    %c0_i32_0 = arith.constant 0 : i32
    return %arg1, %c0_i32 : i32, i32
  }
  func.func @transform_2(%arg0: i32, %arg1: i32) -> (i32, i32) {
    %c0_i32 = arith.constant 0 : i32
    %c0_i32_0 = arith.constant 0 : i32
    return %c0_i32, %arg0 : i32, i32
  }
  func.func @transform_3(%arg0: i32, %arg1: i32) -> (i32, i32) {
    %c0_i32 = arith.constant 0 : i32
    %c0_i32_0 = arith.constant 0 : i32
    return %c0_i32, %arg0 : i32, i32
  }
  func.func @transform_4(%arg0: i32, %arg1: i32) -> (i32, i32) {
    %c0_i32 = arith.constant 0 : i32
    return %arg1, %arg0 : i32, i32
  }
}

</mosaic_0001>

<llo_original>
// kernel: tpu_custom_call.1
$region0: #{tpu_custom_call.1}
  #allocation0 [shape = 'u32[]', space=smem, size = 0x4, offset = 0x4, fixed_abs, tag = 'smem constant byte address 0x4 - core index']
  #allocation1 [shape = 'u32[144,128]{1,0:T(1,128)}', space=vmem, size = 0x12000, scoped, tag = 'internal scratch']
  %s0 = inlined_call_operand.hbm [shape: f32[8,256], index: 0, kind: input, shape index: {}]
  %s1 = inlined_call_operand.vmem [shape: f32[8,1], index: 1, kind: input, shape index: {}]
  %s2 = inlined_call_operand.hbm [shape: f32[256,128], index: 2, kind: input, shape index: {}]
  %s3 = inlined_call_operand.vmem [shape: f32[1,128], index: 3, kind: input, shape index: {}]
  %s4 = inlined_call_operand.hbm [shape: f32[8,128], index: 4, kind: output, shape index: {}]
  %s5 = sld [smem:[#allocation0]]
  $region34: #{tpu_custom_call.1} parent=0
    _
  %s7 = ssub.s32 1, %s5
  %s8 = scalar_select 0, %s7, %s5
  $region1: #{tpu_custom_call.1} parent=0
    #allocation2 [shape = 'u8[8192]{0}', space=vmem, size = 0x2000, scoped, tag = 'input window, operand 0, single buffered']
    #allocation3 [shape = 's32[1]{0}', space=sflag, size = 0x4, scoped, tag = 'scoped memory for tpu_custom_call.1']
    #allocation4 [shape = 's32[1]{0}', space=sflag, size = 0x4, scoped, tag = 'scoped memory for tpu_custom_call.1']
    #allocation5 [shape = 'u8[131072]{0}', space=vmem, size = 0x20000, scoped, tag = 'input window, operand 2, single buffered']
    #allocation6 [shape = 's32[1]{0}', space=sflag, size = 0x4, scoped, tag = 'scoped memory for tpu_custom_call.1']
    #allocation7 [shape = 'u8[4096]{0}', space=vmem, size = 0x1000, scoped, tag = 'output window, operand 0, single buffered']
    %9 = vsyncpa [#allocation3], 0
    %10 = vsyncpa [#allocation6], 0
    %11 = vsyncpa [#allocation4], 0
    // Predicated region
    $region2: #{tpu_custom_call.1} parent=1 // pred_check
      _
    $region3: #{tpu_custom_call.1} parent=1 // pred_check_branch
      %13 = sbr.rel (0) target = $region5
    $region4: #{tpu_custom_call.1} parent=1 // pred_region
      %s15 = ssub.s32 256, 256
      %16 = vsyncadd [#allocation3], %s15
      %s18 = sshll.u32 [#allocation2], 4
      %s19 = int_to_ptr.vmem [resolvable:$true] %s18
      %21 = dma.hbm_to_vmem [thread:$0]  %s0, 256, %s19, [#allocation3]
    $region5: #{tpu_custom_call.1} parent=1 // pred_fallthru
      _
    // Predicated region
    $region6: #{tpu_custom_call.1} parent=1 // pred_check
      _
    $region7: #{tpu_custom_call.1} parent=1 // pred_check_branch
      %23 = sbr.rel (0) target = $region9
    $region8: #{tpu_custom_call.1} parent=1 // pred_region
      _
    $region9: #{tpu_custom_call.1} parent=1 // pred_fallthru
      _
    // Predicated region
    $region10: #{tpu_custom_call.1} parent=1 // pred_check
      _
    $region11: #{tpu_custom_call.1} parent=1 // pred_check_branch
      %25 = sbr.rel (0) target = $region13
    $region12: #{tpu_custom_call.1} parent=1 // pred_region
      %s27 = ssub.s32 4096, 4096
      %28 = vsyncadd [#allocation6], %s27
      %s29 = sshll.u32 [#allocation5], 4
      %s30 = int_to_ptr.vmem [resolvable:$true] %s29
      %35 = dma.hbm_to_vmem [thread:$0]  %s2, 4096, %s30, [#allocation6], 128, 128, 8
    $region13: #{tpu_custom_call.1} parent=1 // pred_fallthru
      _
    // Predicated region
    $region14: #{tpu_custom_call.1} parent=1 // pred_check
      _
    $region15: #{tpu_custom_call.1} parent=1 // pred_check_branch
      %37 = sbr.rel (0) target = $region17
    $region16: #{tpu_custom_call.1} parent=1 // pred_region
      _
    $region17: #{tpu_custom_call.1} parent=1 // pred_fallthru
      _
    // Predicated region
    $region18: #{tpu_custom_call.1} parent=1 // pred_check
      _
    $region19: #{tpu_custom_call.1} parent=1 // pred_check_branch
      %39 = sbr.rel (0) target = $region21
    $region20: #{tpu_custom_call.1} parent=1 // pred_region
      %40 = dma.done [#allocation3], 256
    $region21: #{tpu_custom_call.1} parent=1 // pred_fallthru
      _
    // Predicated region
    $region22: #{tpu_custom_call.1} parent=1 // pred_check
      _
    $region23: #{tpu_custom_call.1} parent=1 // pred_check_branch
      %42 = sbr.rel (0) target = $region25
    $region24: #{tpu_custom_call.1} parent=1 // pred_region
      %43 = dma.done [#allocation6], 4096
    $region25: #{tpu_custom_call.1} parent=1 // pred_fallthru
      _
    %v44 = vld [vmem:[#allocation2] sm:$0xff]
    %v45 = vld [vmem:[#allocation2 + $0x8] sm:$0xff]
    %v46 = vld [vmem:[#allocation5] sm:$0xff]
    %v47 = vld [vmem:[#allocation5 + $0x8] sm:$0xff]
    %v48 = vld [vmem:[#allocation5 + $0x10] sm:$0xff]
    %v49 = vld [vmem:[#allocation5 + $0x18] sm:$0xff]
    %v50 = vld [vmem:[#allocation5 + $0x20] sm:$0xff]
    %v51 = vld [vmem:[#allocation5 + $0x28] sm:$0xff]
    %v52 = vld [vmem:[#allocation5 + $0x30] sm:$0xff]
    %v53 = vld [vmem:[#allocation5 + $0x38] sm:$0xff]
    %v54 = vld [vmem:[#allocation5 + $0x40] sm:$0xff]
    %v55 = vld [vmem:[#allocation5 + $0x48] sm:$0xff]
    %v56 = vld [vmem:[#allocation5 + $0x50] sm:$0xff]
    %v57 = vld [vmem:[#allocation5 + $0x58] sm:$0xff]
    %v58 = vld [vmem:[#allocation5 + $0x60] sm:$0xff]
    %v59 = vld [vmem:[#allocation5 + $0x68] sm:$0xff]
    %v60 = vld [vmem:[#allocation5 + $0x70] sm:$0xff]
    %v61 = vld [vmem:[#allocation5 + $0x78] sm:$0xff]
    %v62 = vld [vmem:[#allocation5 + $0x80] sm:$0xff]
    %v63 = vld [vmem:[#allocation5 + $0x88] sm:$0xff]
    %v64 = vld [vmem:[#allocation5 + $0x90] sm:$0xff]
    %v65 = vld [vmem:[#allocation5 + $0x98] sm:$0xff]
    %v66 = vld [vmem:[#allocation5 + $0xa0] sm:$0xff]
    %v67 = vld [vmem:[#allocation5 + $0xa8] sm:$0xff]
    %v68 = vld [vmem:[#allocation5 + $0xb0] sm:$0xff]
    %v69 = vld [vmem:[#allocation5 + $0xb8] sm:$0xff]
    %v70 = vld [vmem:[#allocation5 + $0xc0] sm:$0xff]
    %v71 = vld [vmem:[#allocation5 + $0xc8] sm:$0xff]
    %v72 = vld [vmem:[#allocation5 + $0xd0] sm:$0xff]
    %v73 = vld [vmem:[#allocation5 + $0xd8] sm:$0xff]
    %v74 = vld [vmem:[#allocation5 + $0xe0] sm:$0xff]
    %v75 = vld [vmem:[#allocation5 + $0xe8] sm:$0xff]
    %v76 = vld [vmem:[#allocation5 + $0xf0] sm:$0xff]
    %v77 = vld [vmem:[#allocation5 + $0xf8] sm:$0xff]
    %78 = vmatprep.subr.mxu0 0.0
    %79 = vmatpush1.msra.mxu0 %v46
    %80 = vmatprep.subr.mxu0 0.0
    %81 = vmatpush1.msra.mxu0 %v47
    %82 = vmatprep.subr.mxu0 0.0
    %83 = vmatpush1.msra.mxu0 %v48
    %84 = vmatprep.subr.mxu0 0.0
    %85 = vmatpush1.msra.mxu0 %v49
    %86 = vmatprep.subr.mxu0 0.0
    %87 = vmatpush1.msra.mxu0 %v50
    %88 = vmatprep.subr.mxu0 0.0
    %89 = vmatpush1.msra.mxu0 %v51
    %90 = vmatprep.subr.mxu0 0.0
    %91 = vmatpush1.msra.mxu0 %v52
    %92 = vmatprep.subr.mxu0 0.0
    %93 = vmatpush1.msra.mxu0 %v53
    %94 = vmatprep.subr.mxu0 0.0
    %95 = vmatpush1.msra.mxu0 %v54
    %96 = vmatprep.subr.mxu0 0.0
    %97 = vmatpush1.msra.mxu0 %v55
    %98 = vmatprep.subr.mxu0 0.0
    %99 = vmatpush1.msra.mxu0 %v56
    %100 = vmatprep.subr.mxu0 0.0
    %101 = vmatpush1.msra.mxu0 %v57
    %102 = vmatprep.subr.mxu0 0.0
    %103 = vmatpush1.msra.mxu0 %v58
    %104 = vmatprep.subr.mxu0 0.0
    %105 = vmatpush1.msra.mxu0 %v59
    %106 = vmatprep.subr.mxu0 0.0
    %107 = vmatpush1.msra.mxu0 %v60
    %108 = vmatprep.subr.mxu0 0.0
    %109 = vmatpush1.msra.mxu0 %v61
    %110 = vmatprep.subr.mxu0 0.0
    %111 = vmatpush1.msra.mxu0 %v62
    %112 = vmatprep.subr.mxu0 0.0
    %113 = vmatpush1.msra.mxu0 %v63
    %114 = vmatprep.subr.mxu0 0.0
    %115 = vmatpush1.msra.mxu0 %v64
    %116 = vmatprep.subr.mxu0 0.0
    %117 = vmatpush1.msra.mxu0 %v65
    %118 = vmatprep.subr.mxu0 0.0
    %119 = vmatpush1.msra.mxu0 %v66
    %120 = vmatprep.subr.mxu0 0.0
    %121 = vmatpush1.msra.mxu0 %v67
    %122 = vmatprep.subr.mxu0 0.0
    %123 = vmatpush1.msra.mxu0 %v68
    %124 = vmatprep.subr.mxu0 0.0
    %125 = vmatpush1.msra.mxu0 %v69
    %126 = vmatprep.subr.mxu0 0.0
    %127 = vmatpush1.msra.mxu0 %v70
    %128 = vmatprep.subr.mxu0 0.0
    %129 = vmatpush1.msra.mxu0 %v71
    %130 = vmatprep.subr.mxu0 0.0
    %131 = vmatpush1.msra.mxu0 %v72
    %132 = vmatprep.subr.mxu0 0.0
    %133 = vmatpush1.msra.mxu0 %v73
    %134 = vmatprep.subr.mxu0 0.0
    %135 = vmatpush1.msra.mxu0 %v74
    %136 = vmatprep.subr.mxu0 0.0
    %137 = vmatpush1.msra.mxu0 %v75
    %138 = vmatprep.subr.mxu0 0.0
    %139 = vmatpush1.msra.mxu0 %v76
    %140 = vmatprep.subr.mxu0 0.0
    %141 = vmatpush1.msra.mxu0 %v77
    %142 = vmatprep.mubr.f32.mxu0 %v45
    %143 = vmatmul.mubr.f32.gmra.mrb[0].mxu0 %v44
    %v144 = vpop.f32.mrb[0].mxu0
    %v145 = vadd.f32 0.0, %v144
    %v146 = vpop.f32.mrb[0].mxu0
    %147 = vdwg.mxu0
    %v148 = vld [vmem:[%s1] sm:$0xff]
    %150 = vset.pattern.permute.xlu0 0
    %151 = vperm.xlu0 %150, %v148
    %v152 = vpop.permute.xlu0 %151
    %v154 = vmul.f32 %v145, %v152
    %v155 = vld [vmem:[%s3] sm:$0x1]
    %v157 = vlaneseq
    %v158 = vshrl.u32 %v157, 7
    %v159 = vsub.s32 0, %v158
    %v160 = vrot.slane %v155, %v159
    %v162 = vmul.f32 %v154, %v160
    %163 = vst [vmem:[#allocation7] sm:$0xff] %v162
    // Predicated region
    $region26: #{tpu_custom_call.1} parent=1 // pred_check
      _
    $region27: #{tpu_custom_call.1} parent=1 // pred_check_branch
      %165 = sbr.rel (0) target = $region29
    $region28: #{tpu_custom_call.1} parent=1 // pred_region
      %s167 = ssub.s32 128, 128
      %168 = vsyncadd [#allocation4], %s167
      %s170 = sshll.u32 [#allocation7], 4
      %s171 = int_to_ptr.vmem [resolvable:$true] %s170
      %173 = dma.vmem_to_hbm [thread:$0]  %s171, 128, %s4, [#allocation4]
    $region29: #{tpu_custom_call.1} parent=1 // pred_fallthru
      _
    // Predicated region
    $region30: #{tpu_custom_call.1} parent=1 // pred_check
      _
    $region31: #{tpu_custom_call.1} parent=1 // pred_check_branch
      %175 = sbr.rel (0) target = $region33
    $region32: #{tpu_custom_call.1} parent=1 // pred_region
      %176 = dma.done [#allocation4], 128
    $region33: #{tpu_custom_call.1} parent=1 // pred_fallthru
      _
    %177 = vsyncpa [#allocation3], 1
    %178 = vsyncpa [#allocation6], 1
    %179 = vsyncpa [#allocation4], 1

</llo_original>
